<compile_context>
chip_gen: v6e
topology: v6e:2x2x1
jax: 0.10.0
libtpu: 0.0.40
codegen_flags: <defaults>
</compile_context>

<pallas_src>
import functools

import jax
import jax.numpy as jnp
from jax.experimental import pallas as pl
from jax.experimental.pallas import tpu as pltpu


LANE = 128  # lane width of the flat slab (last-dim tile unit)


def _round_up(x, m):
    return ((x + m - 1) // m) * m


def _tpu_kind():
    try:
        return jax.devices()[0].device_kind.lower()
    except Exception:
        return ""


def _num_tensorcores():
    # v7x packs 2 TensorCores per chip; v5e/v6e have 1.  On 1-TC chips a core
    # split is just a serial loop with extra masking, so keep it to 1 there.
    return 2 if "v7" in _tpu_kind() else 1


def _default_block_rows_max():
    # 8192 rows x 128 lanes x 4 B = 4 MiB per f32 input block.  v5e's 16 MiB
    # scoped-VMEM default is tight with 2 inputs x 2 pipeline buffers at that
    # size, so cap v5e / unknown chips at 4096 rows (2 MiB blocks).
    kind = _tpu_kind()
    if "v6" in kind or "v7" in kind:
        return 8192
    return 4096


def _mae_sum_kernel(a_ref, b_ref, o_ref, acc_ref, *,
                    per_core, n_row_blocks, rows_in_last,
                    last_is_partial, has_padded_steps):
    c = pl.program_id(0)          # core / parallel axis
    j = pl.program_id(1)          # sequential row-block axis
    g = c * per_core + j          # global row-block index (unclamped)

    @pl.when(j == 0)
    def _():
        acc_ref[...] = jnp.zeros_like(acc_ref)

    def _accum(mask_rows=None):
        d = jnp.abs(a_ref[...].astype(jnp.float32)
                    - b_ref[...].astype(jnp.float32))
        if mask_rows is not None:
            rows = jax.lax.broadcasted_iota(jnp.int32, d.shape, 0)
            d = jnp.where(rows < mask_rows, d, 0.0)
        # (block_rows, 128) -> (block_rows//8, 8, 128): tile-aligned view,
        # reduced over the leading (tile) axis -> pure VALU vreg adds.
        acc_ref[...] += jnp.sum(d.reshape(-1, 8, LANE), axis=0)

    n_full = n_row_blocks - (1 if last_is_partial else 0)

    if not last_is_partial and not has_padded_steps:
        # Steady state only: no mask, no guards.
        _accum()
    else:
        @pl.when(g < n_full)
        def _():
            _accum()

        if last_is_partial:
            @pl.when(g == n_row_blocks - 1)
            def _():
                _accum(mask_rows=rows_in_last)
        # Padded steps (g >= n_row_blocks) fall through: no accumulation.

    @pl.when(j == pl.num_programs(1) - 1)
    def _():
        # Store the per-core (8, LANE) partial sums; wrapper finishes the
        # reduction (no in-kernel cross-lane reduce / broadcast).
        o_ref[...] = acc_ref[...]


def _bulk_abs_sum(a2, b2, *, block_rows_max=None, num_cores=None):
    """sum(|a2 - b2|) over a (n_rows, LANE) slab, via Pallas."""
    assert a2.shape == b2.shape and a2.shape[1] == LANE
    n_rows = a2.shape[0]
    if block_rows_max is None:
        block_rows_max = _default_block_rows_max()
    if num_cores is None:
        num_cores = _num_tensorcores()

    # Block rows always a multiple of 8 so the (., 8, 128) reshape is legal;
    # a final partial block (incl. block_rows > n_rows) is masked in-kernel.
    block_rows = min(block_rows_max, _round_up(n_rows, 8))
    n_row_blocks = pl.cdiv(n_rows, block_rows)
    num_cores = max(1, min(num_cores, n_row_blocks))
    per_core = pl.cdiv(n_row_blocks, num_cores)

    rows_in_last = n_rows - (n_row_blocks - 1) * block_rows
    last_is_partial = rows_in_last != block_rows
    has_padded_steps = num_cores * per_core != n_row_blocks
    last_block = n_row_blocks - 1

    if has_padded_steps:
        # Clamp so padded grid steps never emit an out-of-range block index
        # (they re-fetch the last block but skip accumulation in-kernel).
        def in_map(c, j):
            return (jnp.minimum(c * per_core + j, last_block), 0)
    else:
        def in_map(c, j):
            return (c * per_core + j, 0)

    kernel = functools.partial(
        _mae_sum_kernel, per_core=per_core, n_row_blocks=n_row_blocks,
        rows_in_last=rows_in_last, last_is_partial=last_is_partial,
        has_padded_steps=has_padded_steps)

    # Explicit VMEM budget: 2 inputs x 2 pipeline buffers + f32 temp headroom.
    in_block_bytes = block_rows * LANE * a2.dtype.itemsize
    f32_block_bytes = block_rows * LANE * 4
    needed = 4 * in_block_bytes + 3 * f32_block_bytes + (2 << 20)
    vmem_limit = int(min(max(needed, 16 << 20), 48 << 20))

    out = pl.pallas_call(
        kernel,
        out_shape=jax.ShapeDtypeStruct((num_cores * 8, LANE), jnp.float32),
        grid_spec=pltpu.PrefetchScalarGridSpec(
            num_scalar_prefetch=0,
            grid=(num_cores, per_core),
            in_specs=[
                pl.BlockSpec((block_rows, LANE), in_map),
                pl.BlockSpec((block_rows, LANE), in_map),
            ],
            out_specs=pl.BlockSpec((8, LANE), lambda c, j: (c, 0)),
            scratch_shapes=[pltpu.VMEM((8, LANE), jnp.float32)],
        ),
        compiler_params=pltpu.CompilerParams(
            dimension_semantics=("parallel", "arbitrary"),
            vmem_limit_bytes=vmem_limit),
    )(a2, b2)

    # Tiny wrapper-side reduce over (num_cores*8, 128) partials.
    return jnp.sum(out)


def reconstruct_audio(x):
    # TODO(synk): placeholder value-preserving flatten to (batch, n_samples);
    # swap in the real overlap-add reconstruction if the repo defines one.
    return x.reshape(x.shape[0], -1)


def mae_loss(output_audio, predicted_audio, **batch):
    """Returns {'loss': scalar} = mean(|reconstruct(a) - reconstruct(b)|)."""
    a = reconstruct_audio(output_audio)
    b = reconstruct_audio(predicted_audio)
    assert a.shape == b.shape

    n_total = a.size
    a_flat = a.reshape(-1)
    b_flat = b.reshape(-1)

    r = n_total % LANE
    n_bulk = n_total - r
    n_rows = n_bulk // LANE

    total = jnp.float32(0.0)
    if n_rows > 0:
        if r:
            # TODO(synk): in the non-128-aligned case this prefix slice may
            # materialize an HBM copy of the bulk before the kernel; if it
            # shows in profiles, pad n_samples upstream to a multiple of 128
            # or enable CompilerParams(allow_input_fusion) to fuse the slice.
            a2 = a_flat[:n_bulk].reshape(n_rows, LANE)
            b2 = b_flat[:n_bulk].reshape(n_rows, LANE)
        else:
            # Lane-dense (rows, 128) view of the flat data: free bitcast.
            a2 = a_flat.reshape(n_rows, LANE)
            b2 = b_flat.reshape(n_rows, LANE)
        total = total + _bulk_abs_sum(a2, b2)
    if r:
        # < 128-element flat remainder: negligible, plain JAX.
        ta = a_flat[n_bulk:].astype(jnp.float32)
        tb = b_flat[n_bulk:].astype(jnp.float32)
        total = total + jnp.sum(jnp.abs(ta - tb))

    return {"loss": total / jnp.float32(n_total)}


if __name__ == "__main__":
    key = jax.random.PRNGKey(0)
    k1, k2, k3, k4, k5, k6 = jax.random.split(key, 6)

    # Small audio-like shapes: (batch=2, chunks=4, chunk_len=512).
    output_audio = jax.random.normal(k1, (2, 4, 512), dtype=jnp.float32)
    predicted_audio = jax.random.normal(k2, (2, 4, 512), dtype=jnp.float32)
    loss = jax.block_until_ready(mae_loss(output_audio, predicted_audio)["loss"])
    ref = jnp.mean(jnp.abs(output_audio - predicted_audio))
    assert jnp.allclose(loss, ref, rtol=1e-5, atol=1e-6), (loss, ref)

    # Non-128-aligned total: exercises the masked tiny-bulk + JAX-tail paths.
    a_r = jax.random.normal(k3, (2, 3, 100), dtype=jnp.float32)
    b_r = jax.random.normal(k4, (2, 3, 100), dtype=jnp.float32)
    loss_r = jax.block_until_ready(mae_loss(a_r, b_r)["loss"])
    ref_r = jnp.mean(jnp.abs(a_r - b_r))
    assert jnp.allclose(loss_r, ref_r, rtol=1e-5, atol=1e-6), (loss_r, ref_r)

    # bf16 inputs stay bf16 in HBM; the kernel upcasts per block (f32 accum).
    a_h = jax.random.normal(k5, (2, 2, 1024)).astype(jnp.bfloat16)
    b_h = jax.random.normal(k6, (2, 2, 1024)).astype(jnp.bfloat16)
    loss_h = jax.block_until_ready(mae_loss(a_h, b_h)["loss"])
    ref_h = jnp.mean(jnp.abs(a_h.astype(jnp.float32) - b_h.astype(jnp.float32)))
    assert jnp.allclose(loss_h, ref_h, rtol=1e-5, atol=1e-5), (loss_h, ref_h)

    # Multi-core split + clamped padded step + masked partial block, small scale.
    a3 = jax.random.normal(k3, (40, 128), dtype=jnp.float32)
    b3 = jax.random.normal(k4, (40, 128), dtype=jnp.float32)
    s3 = jax.block_until_ready(
        _bulk_abs_sum(a3, b3, block_rows_max=16, num_cores=2))
    ref3 = jnp.sum(jnp.abs(a3 - b3))
    assert jnp.allclose(s3, ref3, rtol=1e-5, atol=1e-4), (s3, ref3)

    print("KERNEL_OK")
</pallas_src>

<mosaic_0001>
module attributes {stable_mosaic.version = 11 : i64} {
  func.func @_mae_sum_kernel(%arg0: i32, %arg1: i32, %arg2: memref<32x128xf32, #tpu.memory_space<vmem>>, %arg3: memref<32x128xf32, #tpu.memory_space<vmem>>, %arg4: memref<8x128xf32, #tpu.memory_space<vmem>>, %arg5: memref<8x128xf32, #tpu.memory_space<vmem>>) attributes {dimension_semantics = [#tpu.dimension_semantics<parallel>, #tpu.dimension_semantics<arbitrary>], iteration_bounds = array<i64: 1, 1>, scalar_prefetch = 0 : i64, scratch_operands = 1 : i64, tpu.core_type = #tpu.core_type<tc>, window_params = [{transform_indices = @transform_0, window_bounds = array<i64: 32, 128>}, {transform_indices = @transform_1, window_bounds = array<i64: 32, 128>}, {transform_indices = @transform_2, window_bounds = array<i64: 8, 128>}]} {
    %c0_i32 = arith.constant 0 : i32
    %0 = arith.cmpi eq, %arg1, %c0_i32 : i32
    %1 = arith.extui %0 : i1 to i32
    %c0_i32_0 = arith.constant 0 : i32
    %2 = arith.cmpi ne, %1, %c0_i32_0 : i32
    scf.if %2 {
      %cst_10 = arith.constant 0.000000e+00 : f32
      %15 = vector.broadcast %cst_10 : f32 to vector<8x128xf32>
      %c0_11 = arith.constant 0 : index
      %c0_12 = arith.constant 0 : index
      %16 = vector.load %arg5[%c0_11, %c0_12] : memref<8x128xf32, #tpu.memory_space<vmem>>, vector<8x128xf32>
      tpu.vector_store %arg5[%c0_11, %c0_12], %15 {strides = array<i32>} : memref<8x128xf32, #tpu.memory_space<vmem>>, vector<8x128xf32>,
    } else {
    }
    %c0 = arith.constant 0 : index
    %c0_1 = arith.constant 0 : index
    %3 = vector.load %arg2[%c0, %c0_1] : memref<32x128xf32, #tpu.memory_space<vmem>>, vector<32x128xf32>
    %c0_2 = arith.constant 0 : index
    %c0_3 = arith.constant 0 : index
    %4 = vector.load %arg3[%c0_2, %c0_3] : memref<32x128xf32, #tpu.memory_space<vmem>>, vector<32x128xf32>
    %5 = arith.subf %3, %4 : vector<32x128xf32>
    %6 = math.absf %5 : vector<32x128xf32>
    %c0_4 = arith.constant 0 : index
    %c0_5 = arith.constant 0 : index
    %7 = vector.load %arg5[%c0_4, %c0_5] : memref<8x128xf32, #tpu.memory_space<vmem>>, vector<8x128xf32>
    %8 = vector.shape_cast %6 : vector<32x128xf32> to vector<4x8x128xf32>
    %cst = arith.constant dense<0.000000e+00> : vector<8x128xf32>
    %9 = vector.multi_reduction <add>, %8, %cst [0] : vector<4x8x128xf32> to vector<8x128xf32>
    %10 = arith.addf %7, %9 : vector<8x128xf32>
    %c0_6 = arith.constant 0 : index
    %c0_7 = arith.constant 0 : index
    %11 = vector.load %arg5[%c0_6, %c0_7] : memref<8x128xf32, #tpu.memory_space<vmem>>, vector<8x128xf32>
    tpu.vector_store %arg5[%c0_6, %c0_7], %10 {strides = array<i32>} : memref<8x128xf32, #tpu.memory_space<vmem>>, vector<8x128xf32>,
    %c0_i32_8 = arith.constant 0 : i32
    %12 = arith.cmpi eq, %arg1, %c0_i32_8 : i32
    %13 = arith.extui %12 : i1 to i32
    %c0_i32_9 = arith.constant 0 : i32
    %14 = arith.cmpi ne, %13, %c0_i32_9 : i32
    scf.if %14 {
      %c0_10 = arith.constant 0 : index
      %c0_11 = arith.constant 0 : index
      %15 = vector.load %arg5[%c0_10, %c0_11] : memref<8x128xf32, #tpu.memory_space<vmem>>, vector<8x128xf32>
      %c0_12 = arith.constant 0 : index
      %c0_13 = arith.constant 0 : index
      %16 = vector.load %arg4[%c0_12, %c0_13] : memref<8x128xf32, #tpu.memory_space<vmem>>, vector<8x128xf32>
      tpu.vector_store %arg4[%c0_12, %c0_13], %15 {strides = array<i32>} : memref<8x128xf32, #tpu.memory_space<vmem>>, vector<8x128xf32>,
    } else {
    }
    return
  }
  func.func @transform_0(%arg0: i32, %arg1: i32) -> (i32, i32) {
    %c1_i32 = arith.constant 1 : i32
    %0 = arith.muli %arg0, %c1_i32 : i32
    %1 = arith.addi %0, %arg1 : i32
    %c0_i32 = arith.constant 0 : i32
    %c0_i32_0 = arith.constant 0 : i32
    return %1, %c0_i32 : i32, i32
  }
  func.func @transform_1(%arg0: i32, %arg1: i32) -> (i32, i32) {
    %c1_i32 = arith.constant 1 : i32
    %0 = arith.muli %arg0, %c1_i32 : i32
    %1 = arith.addi %0, %arg1 : i32
    %c0_i32 = arith.constant 0 : i32
    %c0_i32_0 = arith.constant 0 : i32
    return %1, %c0_i32 : i32, i32
  }
  func.func @transform_2(%arg0: i32, %arg1: i32) -> (i32, i32) {
    %c0_i32 = arith.constant 0 : i32
    %c0_i32_0 = arith.constant 0 : i32
    return %arg0, %c0_i32 : i32, i32
  }
}

</mosaic_0001>

<llo_original>
// kernel: tpu_custom_call.1
$region0: #{tpu_custom_call.1}
  #allocation0 [shape = 'u32[]', space=smem, size = 0x4, offset = 0x4, fixed_abs, tag = 'smem constant byte address 0x4 - core index']
  #allocation1 [shape = 'u32[144,128]{1,0:T(1,128)}', space=vmem, size = 0x12000, scoped, tag = 'internal scratch']
  #allocation2 [shape = 'f32[8,128]{1,0:T(8,128)}', space=vmem, size = 0x1000, scoped, tag = 'scratch operand']
  %s0 = inlined_call_operand.hbm [shape: f32[32,128], index: 0, kind: input, shape index: {}]
  %s1 = inlined_call_operand.hbm [shape: f32[32,128], index: 1, kind: input, shape index: {}]
  %s2 = inlined_call_operand.hbm [shape: f32[8,128], index: 2, kind: output, shape index: {}]
  %s3 = sld [smem:[#allocation0]]
  $region34: #{tpu_custom_call.1} parent=0
    _
  %s5 = ssub.s32 1, %s3
  %s6 = scalar_select 0, %s5, %s3
  $region1: #{tpu_custom_call.1} parent=0
    #allocation3 [shape = 'u8[16384]{0}', space=vmem, size = 0x4000, scoped, tag = 'input window, operand 0, single buffered']
    #allocation4 [shape = 's32[1]{0}', space=sflag, size = 0x4, scoped, tag = 'scoped memory for tpu_custom_call.1']
    #allocation5 [shape = 's32[1]{0}', space=sflag, size = 0x4, scoped, tag = 'scoped memory for tpu_custom_call.1']
    #allocation6 [shape = 'u8[16384]{0}', space=vmem, size = 0x4000, scoped, tag = 'input window, operand 1, single buffered']
    #allocation7 [shape = 's32[1]{0}', space=sflag, size = 0x4, scoped, tag = 'scoped memory for tpu_custom_call.1']
    #allocation8 [shape = 'u8[4096]{0}', space=vmem, size = 0x1000, scoped, tag = 'output window, operand 0, single buffered']
    %7 = vsyncpa [#allocation4], 0
    %8 = vsyncpa [#allocation7], 0
    %9 = vsyncpa [#allocation5], 0
    // Predicated region
    $region2: #{tpu_custom_call.1} parent=1 // pred_check
      _
    $region3: #{tpu_custom_call.1} parent=1 // pred_check_branch
      %11 = sbr.rel (0) target = $region5
    $region4: #{tpu_custom_call.1} parent=1 // pred_region
      %s12 = sadd.s32 0, 0
      %s13 = smul.u32 4, %s12
      %s15 = ssub.s32 512, 512
      %16 = vsyncadd [#allocation4], %s15
      %s17 = smul.addr %s13, 128
      %s18 = scalar_lea.hbm %s0, %s17
      %s19 = sshll.u32 [#allocation3], 4
      %s20 = int_to_ptr.vmem [resolvable:$true] %s19
      %25 = dma.hbm_to_vmem [thread:$0]  %s18, 512, %s20, [#allocation4], 128, 128, 8
    $region5: #{tpu_custom_call.1} parent=1 // pred_fallthru
      _
    // Predicated region
    $region6: #{tpu_custom_call.1} parent=1 // pred_check
      _
    $region7: #{tpu_custom_call.1} parent=1 // pred_check_branch
      %27 = sbr.rel (0) target = $region9
    $region8: #{tpu_custom_call.1} parent=1 // pred_region
      %s28 = sadd.s32 0, 0
      %s29 = smul.u32 4, %s28
      %s31 = ssub.s32 512, 512
      %32 = vsyncadd [#allocation7], %s31
      %s33 = smul.addr %s29, 128
      %s34 = scalar_lea.hbm %s1, %s33
      %s35 = sshll.u32 [#allocation6], 4
      %s36 = int_to_ptr.vmem [resolvable:$true] %s35
      %41 = dma.hbm_to_vmem [thread:$0]  %s34, 512, %s36, [#allocation7], 128, 128, 8
    $region9: #{tpu_custom_call.1} parent=1 // pred_fallthru
      _
    // Predicated region
    $region10: #{tpu_custom_call.1} parent=1 // pred_check
      _
    $region11: #{tpu_custom_call.1} parent=1 // pred_check_branch
      %43 = sbr.rel (0) target = $region13
    $region12: #{tpu_custom_call.1} parent=1 // pred_region
      %44 = dma.done [#allocation4], 512
    $region13: #{tpu_custom_call.1} parent=1 // pred_fallthru
      _
    // Predicated region
    $region14: #{tpu_custom_call.1} parent=1 // pred_check
      _
    $region15: #{tpu_custom_call.1} parent=1 // pred_check_branch
      %46 = sbr.rel (0) target = $region17
    $region16: #{tpu_custom_call.1} parent=1 // pred_region
      %47 = dma.done [#allocation7], 512
    $region17: #{tpu_custom_call.1} parent=1 // pred_fallthru
      _
    %s48 = sadd.s32 0, 0
    %s49 = smul.u32 4, %s48
    %s50 = sadd.s32 0, 0
    %s51 = smul.u32 4, %s50
    %p52 = scmp.eq.s32.totalorder 0, 0
    // Predicated region
    $region18: #{tpu_custom_call.1} parent=1 // pred_check
      %p53 = pneg %p52
    $region19: #{tpu_custom_call.1} parent=1 // pred_check_branch
      %55 = sbr.rel (%p53) target = $region21
    $region20: #{tpu_custom_call.1} parent=1 // pred_region
      %56 = vst [vmem:[#allocation2] sm:$0xff] 0.0
    $region21: #{tpu_custom_call.1} parent=1 // pred_fallthru
      _
    %v57 = vld [vmem:[#allocation3] sm:$0xff]
    %v58 = vld [vmem:[#allocation3 + $0x8] sm:$0xff]
    %v59 = vld [vmem:[#allocation3 + $0x10] sm:$0xff]
    %v60 = vld [vmem:[#allocation3 + $0x18] sm:$0xff]
    %v61 = vld [vmem:[#allocation6] sm:$0xff]
    %v62 = vld [vmem:[#allocation6 + $0x8] sm:$0xff]
    %v63 = vld [vmem:[#allocation6 + $0x10] sm:$0xff]
    %v64 = vld [vmem:[#allocation6 + $0x18] sm:$0xff]
    %v65 = vsub.f32 %v57, %v61
    %v66 = vsub.f32 %v58, %v62
    %v67 = vsub.f32 %v59, %v63
    %v68 = vsub.f32 %v60, %v64
    %v69 = vand.u32 2147483647, %v65
    %v70 = vand.u32 2147483647, %v66
    %v71 = vand.u32 2147483647, %v67
    %v72 = vand.u32 2147483647, %v68
    %v73 = vld [vmem:[#allocation2] sm:$0xff]
    %v74 = vadd.f32 %v69, %v70
    %v75 = vadd.f32 %v74, %v71
    %v76 = vadd.f32 %v75, %v72
    %v77 = vadd.f32 %v73, %v76
    %78 = vst [vmem:[#allocation2] sm:$0xff] %v77
    // Predicated region
    $region22: #{tpu_custom_call.1} parent=1 // pred_check
      %p79 = pneg %p52
    $region23: #{tpu_custom_call.1} parent=1 // pred_check_branch
      %81 = sbr.rel (%p79) target = $region25
    $region24: #{tpu_custom_call.1} parent=1 // pred_region
      %v82 = vld [vmem:[#allocation2] sm:$0xff]
      %83 = vst [vmem:[#allocation8] sm:$0xff] %v82
    $region25: #{tpu_custom_call.1} parent=1 // pred_fallthru
      _
    // Predicated region
    $region26: #{tpu_custom_call.1} parent=1 // pred_check
      _
    $region27: #{tpu_custom_call.1} parent=1 // pred_check_branch
      %85 = sbr.rel (0) target = $region29
    $region28: #{tpu_custom_call.1} parent=1 // pred_region
      %s87 = ssub.s32 128, 128
      %88 = vsyncadd [#allocation5], %s87
      %s90 = sshll.u32 [#allocation8], 4
      %s91 = int_to_ptr.vmem [resolvable:$true] %s90
      %93 = dma.vmem_to_hbm [thread:$0]  %s91, 128, %s2, [#allocation5]
    $region29: #{tpu_custom_call.1} parent=1 // pred_fallthru
      _
    // Predicated region
    $region30: #{tpu_custom_call.1} parent=1 // pred_check
      _
    $region31: #{tpu_custom_call.1} parent=1 // pred_check_branch
      %95 = sbr.rel (0) target = $region33
    $region32: #{tpu_custom_call.1} parent=1 // pred_region
      %96 = dma.done [#allocation5], 128
    $region33: #{tpu_custom_call.1} parent=1 // pred_fallthru
      _
    %97 = vsyncpa [#allocation4], 1
    %98 = vsyncpa [#allocation7], 1
    %99 = vsyncpa [#allocation5], 1

</llo_original>
